<compile_context>
chip_gen: v5e
topology: v5e:2x2
jax: 0.10.0
libtpu: 0.0.40
codegen_flags: <defaults>
</compile_context>

<pallas_src>
import jax
import jax.numpy as jnp
from jax.experimental import pallas as pl
from jax.experimental.pallas import tpu as pltpu

LEAKY_SLOPE = 0.01


def _round_up(x, m):
    return (x + m - 1) // m * m


# ----------------------------------------------------------------------------
# Fused Pallas kernel: entire forward pass (4 packed layers) in one call
# ----------------------------------------------------------------------------
def make_kernel(n_layers, act_flags):
    """Kernel over packed slabs.

    Refs:
      x_ref : (TM_or_B, PAD) bf16   — zero-padded, natural cond|wing|foil order
      w_ref : (L, PAD, PAD) bf16    — per-layer zero-padded weights
      b_ref : (L, 1, PAD)  f32      — per-layer zero-padded biases
      o_ref : (TM_or_B, PAD) f32
    """

    def kernel(x_ref, w_ref, b_ref, o_ref):
        h = x_ref[...]  # bf16 activations
        for l in range(n_layers):
            acc = jnp.dot(h, w_ref[l], preferred_element_type=jnp.float32)
            acc = acc + b_ref[l]
            if act_flags[l]:
                acc = jnp.where(acc > 0, acc, LEAKY_SLOPE * acc)  # f32 VPU math
            h = acc.astype(jnp.bfloat16) if l + 1 < n_layers else acc
        o_ref[...] = h.astype(o_ref.dtype)

    return kernel


# ----------------------------------------------------------------------------
# Parameters (deterministic, synthetic)
# ----------------------------------------------------------------------------
class ParamGen:
    def __init__(self, key):
        self.key = key

    def normal(self, shape, scale=0.05):
        self.key, sub = jax.random.split(self.key)
        return jax.random.normal(sub, shape, jnp.float32) * scale


def init_mlp(pg, d_in, dims):
    layers, d0 = [], d_in
    for d in dims:
        layers.append((pg.normal((d0, d)), pg.normal((d,))))
        d0 = d
    return layers


def init_params(key, h_e1, h_e2, h_e3, h_d1):
    pg = ParamGen(key)
    d_lat = h_e1[-1] + h_e2[-1] + h_e3[-1]
    return {
        "foil": init_mlp(pg, 21, h_e1),   # inputs[:, 8:]
        "wing": init_mlp(pg, 6, h_e2),    # inputs[:, 2:8]
        "cond": init_mlp(pg, 2, h_e3),    # inputs[:, :2]
        "mlp":  init_mlp(pg, d_lat, h_d1),
    }


# ----------------------------------------------------------------------------
# Pack the whole model into one bf16 weight slab + one f32 bias slab
# ----------------------------------------------------------------------------
def pack_model(params, h_e1, h_e2, h_e3, h_d1):
    d_cond_in, d_wing_in, d_foil_in = 2, 6, 21
    in_feats = d_cond_in + d_wing_in + d_foil_in  # 29, natural cond|wing|foil order

    D = len(h_e1)
    assert len(h_e2) == D and len(h_e3) == D, "block-diag merge needs equal encoder depths"
    # TODO(synk): unequal encoder depths would need identity-padding of the shorter encoders.

    layers = []  # list of (W (K,N) f32, b (N,) f32, act: bool)

    # Merged encoder layers: block order cond | wing | foil (matches input column order).
    for l in range(D):
        blocks = [params["cond"][l], params["wing"][l], params["foil"][l]]
        ks = [w.shape[0] for w, _ in blocks]
        ns = [w.shape[1] for w, _ in blocks]
        W = jnp.zeros((sum(ks), sum(ns)), jnp.float32)
        ro = co = 0
        for (w, _), k, n in zip(blocks, ks, ns):
            W = W.at[ro:ro + k, co:co + n].set(w)
            ro += k
            co += n
        bvec = jnp.concatenate([b for _, b in blocks])
        layers.append((W, bvec, l < D - 1))

    # Final MLP layer 0: permute rows from torch's (cond|foil|wing) concat order
    # to the merged (cond|wing|foil) activation order.
    d_c, d_f, d_w = h_e3[-1], h_e1[-1], h_e2[-1]
    w0, b0 = params["mlp"][0]
    w0p = jnp.concatenate([w0[:d_c], w0[d_c + d_f:], w0[d_c:d_c + d_f]], axis=0)
    n_mlp = len(h_d1)
    layers.append((w0p, b0, 0 < n_mlp - 1))
    for li in range(1, n_mlp):
        w, b = params["mlp"][li]
        layers.append((w, b, li < n_mlp - 1))

    # Pad every layer to (PAD, PAD) and stack: one bf16 weight slab, one f32 bias slab.
    max_dim = max([in_feats] + [max(w.shape) for w, _, _ in layers])
    PAD = _round_up(max_dim, 128)  # lane-dense (multiple of 128) for all layers
    L = len(layers)
    w_slab = jnp.zeros((L, PAD, PAD), jnp.float32)
    b_slab = jnp.zeros((L, 1, PAD), jnp.float32)
    for i, (w, b, _) in enumerate(layers):
        k, n = w.shape
        w_slab = w_slab.at[i, :k, :n].set(w)
        b_slab = b_slab.at[i, 0, :n].set(b)
    act_flags = tuple(a for _, _, a in layers)
    return w_slab.astype(jnp.bfloat16), b_slab, act_flags, PAD, in_feats


# ----------------------------------------------------------------------------
# Forward wrapper
# ----------------------------------------------------------------------------
def build_forward(params, h_e1, h_e2, h_e3, h_d1, nt):
    w_slab, b_slab, act_flags, PAD, in_feats = pack_model(params, h_e1, h_e2, h_e3, h_d1)
    L = w_slab.shape[0]
    kernel = make_kernel(L, act_flags)
    d_out = h_d1[-1]
    TM = 256  # row tile for the large-batch path

    def forward(inputs):
        B = inputs.shape[0]
        # Wrapper-side input prep (free layout plumbing): the input column order
        # is already cond|wing|foil, so only zero-pad to PAD lanes and pre-cast
        # to bf16 — no in-kernel lane slices or casts on the critical path.
        x = jnp.zeros((B, PAD), jnp.bfloat16).at[:, :in_feats].set(
            inputs.astype(jnp.bfloat16))

        if B <= TM:
            # Whole arrays as single full-array blocks (tiny batch, launch-bound).
            out = pl.pallas_call(
                kernel,
                out_shape=jax.ShapeDtypeStruct((B, PAD), jnp.float32),
            )(x, w_slab, b_slab)
        else:
            # Large batch: 1-D parallel row grid; weight/bias slabs use a
            # constant block index so they stay VMEM-resident across row tiles.
            Bp = _round_up(B, TM)
            if Bp != B:
                x = jnp.zeros((Bp, PAD), jnp.bfloat16).at[:B].set(x)
            out = pl.pallas_call(
                kernel,
                out_shape=jax.ShapeDtypeStruct((Bp, PAD), jnp.float32),
                grid=(Bp // TM,),
                in_specs=[
                    pl.BlockSpec((TM, PAD), lambda i: (i, 0)),
                    pl.BlockSpec((L, PAD, PAD), lambda i: (0, 0, 0)),
                    pl.BlockSpec((L, 1, PAD), lambda i: (0, 0, 0)),
                ],
                out_specs=pl.BlockSpec((TM, PAD), lambda i: (i, 0)),
                compiler_params=pltpu.CompilerParams(
                    dimension_semantics=("parallel",)),
            )(x, w_slab, b_slab)
            out = out[:B]

        out = out[:, :d_out]  # no-op when d_out == PAD (demo: 128)
        if nt > 0:
            return out.reshape(-1, d_out // nt, nt)
        return out

    return forward


# ----------------------------------------------------------------------------
# Pure-JAX reference (f32) for correctness check
# ----------------------------------------------------------------------------
def reference_forward(params, inputs, nt, h_d1):
    def mlp_ref(x, layers):
        n = len(layers)
        for i, (w, b) in enumerate(layers):
            x = x @ w + b
            if i < n - 1:
                x = jnp.where(x > 0, x, LEAKY_SLOPE * x)
        return x

    foil = mlp_ref(inputs[:, 8:], params["foil"])
    wing = mlp_ref(inputs[:, 2:8], params["wing"])
    cond = mlp_ref(inputs[:, :2], params["cond"])
    enc = jnp.concatenate([cond, foil, wing], axis=1)
    out = mlp_ref(enc, params["mlp"])
    if nt > 0:
        return out.reshape(-1, h_d1[-1] // nt, nt)
    return out


# ----------------------------------------------------------------------------
if __name__ == "__main__":
    # Small, consistent hyper-parameters
    h_e1 = [24, 16]     # foil encoder: 21 -> 24 -> 16
    h_e2 = [16, 16]     # wing encoder: 6  -> 16 -> 16
    h_e3 = [8, 8]       # cond encoder: 2  -> 8  -> 8
    h_d1 = [64, 128]    # final mlp: 40 -> 64 -> 128 (lane-dense output)
    nt = 8              # last_size = [-1, 128 // 8, 8] = [-1, 16, 8]
    batch = 2

    key = jax.random.PRNGKey(0)
    pkey, xkey, xkey2 = jax.random.split(key, 3)
    params = init_params(pkey, h_e1, h_e2, h_e3, h_d1)
    inputs = jax.random.normal(xkey, (batch, 29), jnp.float32)  # 2 cond + 6 wing + 21 foil

    fwd = jax.jit(build_forward(params, h_e1, h_e2, h_e3, h_d1, nt))

    # Small-batch (launch-bound) path
    out = fwd(inputs)
    jax.block_until_ready(out)
    assert out.shape == (batch, h_d1[-1] // nt, nt), out.shape
    assert bool(jnp.all(jnp.isfinite(out)))
    ref = reference_forward(params, inputs, nt, h_d1)
    max_err = float(jnp.max(jnp.abs(out - ref)))
    assert bool(jnp.allclose(out, ref, rtol=3e-2, atol=2e-3)), max_err

    # Large-batch (tiled, parallel-grid) path — exercises padding + row tiling
    big_batch = 300
    inputs_big = jax.random.normal(xkey2, (big_batch, 29), jnp.float32)
    out_big = fwd(inputs_big)
    jax.block_until_ready(out_big)
    assert out_big.shape == (big_batch, h_d1[-1] // nt, nt), out_big.shape
    ref_big = reference_forward(params, inputs_big, nt, h_d1)
    max_err_big = float(jnp.max(jnp.abs(out_big - ref_big)))
    assert bool(jnp.allclose(out_big, ref_big, rtol=3e-2, atol=2e-3)), max_err_big

    print("KERNEL_OK")
</pallas_src>

<mosaic_0001>
module attributes {stable_mosaic.version = 11 : i64} {
  func.func @kernel(%arg0: memref<2x128xbf16, #tpu.memory_space<vmem>>, %arg1: memref<4x128x128xbf16, #tpu.memory_space<vmem>>, %arg2: memref<4x1x128xf32, #tpu.memory_space<vmem>>, %arg3: memref<2x128xf32, #tpu.memory_space<vmem>>) attributes {dimension_semantics = [], scalar_prefetch = 0 : i64, scratch_operands = 0 : i64, tpu.core_type = #tpu.core_type<tc>} {
    %c0 = arith.constant 0 : index
    %c0_0 = arith.constant 0 : index
    %0 = vector.load %arg0[%c0, %c0_0] : memref<2x128xbf16, #tpu.memory_space<vmem>>, vector<2x128xbf16>
    %c0_1 = arith.constant 0 : index
    %c0_2 = arith.constant 0 : index
    %c0_3 = arith.constant 0 : index
    %1 = vector.load %arg1[%c0_1, %c0_2, %c0_3] : memref<4x128x128xbf16, #tpu.memory_space<vmem>>, vector<1x128x128xbf16>
    %2 = vector.shape_cast %1 : vector<1x128x128xbf16> to vector<128x128xbf16>
    %cst = arith.constant dense<0.000000e+00> : vector<2x128xf32>
    %3 = tpu.matmul %0, %2, %cst {dimension_numbers = #tpu.dot_dimension_numbers<[1], [0], [0], [1], [0, 0, 1, 1], [], []>} : vector<2x128xbf16>, vector<128x128xbf16>, vector<2x128xf32> -> vector<2x128xf32>
    %c0_4 = arith.constant 0 : index
    %c0_5 = arith.constant 0 : index
    %c0_6 = arith.constant 0 : index
    %4 = vector.load %arg2[%c0_4, %c0_5, %c0_6] : memref<4x1x128xf32, #tpu.memory_space<vmem>>, vector<1x1x128xf32>
    %5 = vector.shape_cast %4 : vector<1x1x128xf32> to vector<1x128xf32>
    %6 = vector.broadcast %5 : vector<1x128xf32> to vector<2x128xf32>
    %7 = arith.addf %3, %6 : vector<2x128xf32>
    %cst_7 = arith.constant 0.000000e+00 : f32
    %8 = vector.broadcast %cst_7 : f32 to vector<2x128xf32>
    %9 = arith.cmpf ogt, %7, %8 : vector<2x128xf32>
    %cst_8 = arith.constant 0.00999999977 : f32
    %10 = vector.broadcast %cst_8 : f32 to vector<2x128xf32>
    %11 = arith.mulf %10, %7 : vector<2x128xf32>
    %12 = arith.select %9, %7, %11 : vector<2x128xi1>, vector<2x128xf32>
    %13 = arith.truncf %12 : vector<2x128xf32> to vector<2x128xbf16>
    %c1 = arith.constant 1 : index
    %c0_9 = arith.constant 0 : index
    %c0_10 = arith.constant 0 : index
    %14 = vector.load %arg1[%c1, %c0_9, %c0_10] : memref<4x128x128xbf16, #tpu.memory_space<vmem>>, vector<1x128x128xbf16>
    %15 = vector.shape_cast %14 : vector<1x128x128xbf16> to vector<128x128xbf16>
    %cst_11 = arith.constant dense<0.000000e+00> : vector<2x128xf32>
    %16 = tpu.matmul %13, %15, %cst_11 {dimension_numbers = #tpu.dot_dimension_numbers<[1], [0], [0], [1], [0, 0, 1, 1], [], []>} : vector<2x128xbf16>, vector<128x128xbf16>, vector<2x128xf32> -> vector<2x128xf32>
    %c1_12 = arith.constant 1 : index
    %c0_13 = arith.constant 0 : index
    %c0_14 = arith.constant 0 : index
    %17 = vector.load %arg2[%c1_12, %c0_13, %c0_14] : memref<4x1x128xf32, #tpu.memory_space<vmem>>, vector<1x1x128xf32>
    %18 = vector.shape_cast %17 : vector<1x1x128xf32> to vector<1x128xf32>
    %19 = vector.broadcast %18 : vector<1x128xf32> to vector<2x128xf32>
    %20 = arith.addf %16, %19 : vector<2x128xf32>
    %21 = arith.truncf %20 : vector<2x128xf32> to vector<2x128xbf16>
    %c2 = arith.constant 2 : index
    %c0_15 = arith.constant 0 : index
    %c0_16 = arith.constant 0 : index
    %22 = vector.load %arg1[%c2, %c0_15, %c0_16] : memref<4x128x128xbf16, #tpu.memory_space<vmem>>, vector<1x128x128xbf16>
    %23 = vector.shape_cast %22 : vector<1x128x128xbf16> to vector<128x128xbf16>
    %cst_17 = arith.constant dense<0.000000e+00> : vector<2x128xf32>
    %24 = tpu.matmul %21, %23, %cst_17 {dimension_numbers = #tpu.dot_dimension_numbers<[1], [0], [0], [1], [0, 0, 1, 1], [], []>} : vector<2x128xbf16>, vector<128x128xbf16>, vector<2x128xf32> -> vector<2x128xf32>
    %c2_18 = arith.constant 2 : index
    %c0_19 = arith.constant 0 : index
    %c0_20 = arith.constant 0 : index
    %25 = vector.load %arg2[%c2_18, %c0_19, %c0_20] : memref<4x1x128xf32, #tpu.memory_space<vmem>>, vector<1x1x128xf32>
    %26 = vector.shape_cast %25 : vector<1x1x128xf32> to vector<1x128xf32>
    %27 = vector.broadcast %26 : vector<1x128xf32> to vector<2x128xf32>
    %28 = arith.addf %24, %27 : vector<2x128xf32>
    %cst_21 = arith.constant 0.000000e+00 : f32
    %29 = vector.broadcast %cst_21 : f32 to vector<2x128xf32>
    %30 = arith.cmpf ogt, %28, %29 : vector<2x128xf32>
    %cst_22 = arith.constant 0.00999999977 : f32
    %31 = vector.broadcast %cst_22 : f32 to vector<2x128xf32>
    %32 = arith.mulf %31, %28 : vector<2x128xf32>
    %33 = arith.select %30, %28, %32 : vector<2x128xi1>, vector<2x128xf32>
    %34 = arith.truncf %33 : vector<2x128xf32> to vector<2x128xbf16>
    %c3 = arith.constant 3 : index
    %c0_23 = arith.constant 0 : index
    %c0_24 = arith.constant 0 : index
    %35 = vector.load %arg1[%c3, %c0_23, %c0_24] : memref<4x128x128xbf16, #tpu.memory_space<vmem>>, vector<1x128x128xbf16>
    %36 = vector.shape_cast %35 : vector<1x128x128xbf16> to vector<128x128xbf16>
    %cst_25 = arith.constant dense<0.000000e+00> : vector<2x128xf32>
    %37 = tpu.matmul %34, %36, %cst_25 {dimension_numbers = #tpu.dot_dimension_numbers<[1], [0], [0], [1], [0, 0, 1, 1], [], []>} : vector<2x128xbf16>, vector<128x128xbf16>, vector<2x128xf32> -> vector<2x128xf32>
    %c3_26 = arith.constant 3 : index
    %c0_27 = arith.constant 0 : index
    %c0_28 = arith.constant 0 : index
    %38 = vector.load %arg2[%c3_26, %c0_27, %c0_28] : memref<4x1x128xf32, #tpu.memory_space<vmem>>, vector<1x1x128xf32>
    %39 = vector.shape_cast %38 : vector<1x1x128xf32> to vector<1x128xf32>
    %40 = vector.broadcast %39 : vector<1x128xf32> to vector<2x128xf32>
    %41 = arith.addf %37, %40 : vector<2x128xf32>
    %c0_29 = arith.constant 0 : index
    %c0_30 = arith.constant 0 : index
    %42 = vector.load %arg3[%c0_29, %c0_30] : memref<2x128xf32, #tpu.memory_space<vmem>>, vector<2x128xf32>
    tpu.vector_store %arg3[%c0_29, %c0_30], %41 {strides = array<i32>} : memref<2x128xf32, #tpu.memory_space<vmem>>, vector<2x128xf32>,
    return
  }
}

</mosaic_0001>

<llo_original>
// kernel: forward.1
$region0: #{forward.1}
  #allocation0 [shape = 'u32[]', space=smem, size = 0x4, offset = 0x4, fixed_abs, tag = 'smem constant byte address 0x4 - core index']
  #allocation1 [shape = 'u32[72,128]{1,0:T(1,128)}', space=vmem, size = 0x9000, scoped, tag = 'internal scratch']
  %s0 = inlined_call_operand.vmem [shape: bf16[2,128], index: 0, kind: input, shape index: {}]
  %s1 = inlined_call_operand.hbm [shape: bf16[4,128,128], index: 1, kind: input, shape index: {}]
  %s2 = inlined_call_operand.vmem [shape: f32[4,1,128], index: 2, kind: input, shape index: {}]
  %s3 = inlined_call_operand.vmem [shape: f32[2,128], index: 3, kind: output, shape index: {}]
  %s4 = sld [smem:[#allocation0]]
  $region26: #{forward.1} parent=0
    _
  %s6 = ssub.s32 1, %s4
  %s7 = scalar_select 0, %s6, %s4
  $region1: #{forward.1} parent=0
    #allocation2 [shape = 'u8[131072]{0}', space=vmem, size = 0x20000, scoped, tag = 'input window, operand 1, single buffered']
    #allocation3 [shape = 's32[1]{0}', space=sflag, size = 0x4, scoped, tag = 'scoped memory for forward.1']
    %8 = vsyncpa [#allocation3], 0
    // Predicated region
    $region2: #{forward.1} parent=1 // pred_check
      _
    $region3: #{forward.1} parent=1 // pred_check_branch
      %10 = sbr.rel (0) target = $region5
    $region4: #{forward.1} parent=1 // pred_region
      _
    $region5: #{forward.1} parent=1 // pred_fallthru
      _
    // Predicated region
    $region6: #{forward.1} parent=1 // pred_check
      _
    $region7: #{forward.1} parent=1 // pred_check_branch
      %12 = sbr.rel (0) target = $region9
    $region8: #{forward.1} parent=1 // pred_region
      %14 = vsyncadd [#allocation3], 0
      %s15 = sshll.u32 %s1, 4
      %s16 = int_to_ptr.hbm [resolvable:$true] %s15
      %s17 = sshll.u32 [#allocation2], 4
      %s18 = int_to_ptr.vmem [resolvable:$true] %s17
      %23 = dma.hbm_to_vmem [thread:$0]  %s16, 4096, %s18, [#allocation3], 64, 64, 4
    $region9: #{forward.1} parent=1 // pred_fallthru
      _
    // Predicated region
    $region10: #{forward.1} parent=1 // pred_check
      _
    $region11: #{forward.1} parent=1 // pred_check_branch
      %25 = sbr.rel (0) target = $region13
    $region12: #{forward.1} parent=1 // pred_region
      _
    $region13: #{forward.1} parent=1 // pred_fallthru
      _
    // Predicated region
    $region14: #{forward.1} parent=1 // pred_check
      _
    $region15: #{forward.1} parent=1 // pred_check_branch
      %27 = sbr.rel (0) target = $region17
    $region16: #{forward.1} parent=1 // pred_region
      %29 = dma.done [#allocation3], 4096
    $region17: #{forward.1} parent=1 // pred_fallthru
      _
    %v30 = vld [vmem:[%s0] sm:$0x1]
    %v31 = vld [vmem:[#allocation2] sm:$0xf]
    %v32 = vld [vmem:[#allocation2 + $0x4] sm:$0xf]
    %v33 = vld [vmem:[#allocation2 + $0x8] sm:$0xf]
    %v34 = vld [vmem:[#allocation2 + $0xc] sm:$0xf]
    %v35 = vld [vmem:[#allocation2 + $0x10] sm:$0xf]
    %v36 = vld [vmem:[#allocation2 + $0x14] sm:$0xf]
    %v37 = vld [vmem:[#allocation2 + $0x18] sm:$0xf]
    %v38 = vld [vmem:[#allocation2 + $0x1c] sm:$0xf]
    %v39 = vld [vmem:[#allocation2 + $0x20] sm:$0xf]
    %v40 = vld [vmem:[#allocation2 + $0x24] sm:$0xf]
    %v41 = vld [vmem:[#allocation2 + $0x28] sm:$0xf]
    %v42 = vld [vmem:[#allocation2 + $0x2c] sm:$0xf]
    %v43 = vld [vmem:[#allocation2 + $0x30] sm:$0xf]
    %v44 = vld [vmem:[#allocation2 + $0x34] sm:$0xf]
    %v45 = vld [vmem:[#allocation2 + $0x38] sm:$0xf]
    %v46 = vld [vmem:[#allocation2 + $0x3c] sm:$0xf]
    %v47 = vld [vmem:[%s2] sm:$0x1]
    %v49 = vperm.slane %v47, 0
    %v67 = vunpack.c.l.b16 %v31
    %v68 = vunpack.c.l.b16 %v32
    %v69 = vunpack.c.l.b16 %v33
    %v70 = vunpack.c.l.b16 %v34
    %v71 = vunpack.c.l.b16 %v35
    %v72 = vunpack.c.l.b16 %v36
    %v73 = vunpack.c.l.b16 %v37
    %v74 = vunpack.c.l.b16 %v38
    %v75 = vunpack.c.l.b16 %v39
    %v76 = vunpack.c.l.b16 %v40
    %v77 = vunpack.c.l.b16 %v41
    %v78 = vunpack.c.l.b16 %v42
    %v79 = vunpack.c.l.b16 %v43
    %v80 = vunpack.c.l.b16 %v44
    %v81 = vunpack.c.l.b16 %v45
    %v82 = vunpack.c.l.b16 %v46
    %v83 = vpack.c.b16 %v68, %v67
    %v84 = vpack.c.b16 %v70, %v69
    %v85 = vpack.c.b16 %v72, %v71
    %v86 = vpack.c.b16 %v74, %v73
    %v87 = vpack.c.b16 %v76, %v75
    %v88 = vpack.c.b16 %v78, %v77
    %v89 = vpack.c.b16 %v80, %v79
    %v90 = vpack.c.b16 %v82, %v81
    %99 = vmatpush.bf16.msra.mxu0 %v90
    %100 = vmatpush.bf16.msra.mxu0 %v89
    %101 = vmatpush.bf16.msra.mxu0 %v88
    %102 = vmatpush.bf16.msra.mxu0 %v87
    %103 = vmatpush.bf16.msra.mxu0 %v86
    %104 = vmatpush.bf16.msra.mxu0 %v85
    %105 = vmatpush.bf16.msra.mxu0 %v84
    %106 = vmatpush.bf16.msra.mxu0 %v83
    %107 = vmatmul.bf16.gmra.mxu0 %v30
    %v108 = vpop.f32.mrf.mxu0
    %v109 = vadd.f32 %v49, %v108
    %v110 = vpop.f32.mrf.mxu0
    %111 = vdwg.mxu0
    %vm112 = vcmp.gt.f32.partialorder %v109, 0.0
    %v113 = vmul.f32 %v109, 0.01
    %v114 = vsel %vm112, %v109, %v113
    %v115 = vpack.c.bf16 %v114, %v114
    %s116 = scalar_lea.vmem [#allocation2], 64
    %v117 = vld [vmem:[%s116] sm:$0xf]
    %v118 = vld [vmem:[%s116 + $0x4] sm:$0xf]
    %v119 = vld [vmem:[%s116 + $0x8] sm:$0xf]
    %v120 = vld [vmem:[%s116 + $0xc] sm:$0xf]
    %v121 = vld [vmem:[%s116 + $0x10] sm:$0xf]
    %v122 = vld [vmem:[%s116 + $0x14] sm:$0xf]
    %v123 = vld [vmem:[%s116 + $0x18] sm:$0xf]
    %v124 = vld [vmem:[%s116 + $0x1c] sm:$0xf]
    %v125 = vld [vmem:[%s116 + $0x20] sm:$0xf]
    %v126 = vld [vmem:[%s116 + $0x24] sm:$0xf]
    %v127 = vld [vmem:[%s116 + $0x28] sm:$0xf]
    %v128 = vld [vmem:[%s116 + $0x2c] sm:$0xf]
    %v129 = vld [vmem:[%s116 + $0x30] sm:$0xf]
    %v130 = vld [vmem:[%s116 + $0x34] sm:$0xf]
    %v131 = vld [vmem:[%s116 + $0x38] sm:$0xf]
    %v132 = vld [vmem:[%s116 + $0x3c] sm:$0xf]
    %s133 = scalar_lea.vmem %s2, 1
    %v134 = vld [vmem:[%s133] sm:$0x1]
    %v136 = vperm.slane %v134, 0
    %v154 = vunpack.c.l.b16 %v117
    %v155 = vunpack.c.l.b16 %v118
    %v156 = vunpack.c.l.b16 %v119
    %v157 = vunpack.c.l.b16 %v120
    %v158 = vunpack.c.l.b16 %v121
    %v159 = vunpack.c.l.b16 %v122
    %v160 = vunpack.c.l.b16 %v123
    %v161 = vunpack.c.l.b16 %v124
    %v162 = vunpack.c.l.b16 %v125
    %v163 = vunpack.c.l.b16 %v126
    %v164 = vunpack.c.l.b16 %v127
    %v165 = vunpack.c.l.b16 %v128
    %v166 = vunpack.c.l.b16 %v129
    %v167 = vunpack.c.l.b16 %v130
    %v168 = vunpack.c.l.b16 %v131
    %v169 = vunpack.c.l.b16 %v132
    %v170 = vpack.c.b16 %v155, %v154
    %v171 = vpack.c.b16 %v157, %v156
    %v172 = vpack.c.b16 %v159, %v158
    %v173 = vpack.c.b16 %v161, %v160
    %v174 = vpack.c.b16 %v163, %v162
    %v175 = vpack.c.b16 %v165, %v164
    %v176 = vpack.c.b16 %v167, %v166
    %v177 = vpack.c.b16 %v169, %v168
    %186 = vmatpush.bf16.msra.mxu0 %v177
    %187 = vmatpush.bf16.msra.mxu0 %v176
    %188 = vmatpush.bf16.msra.mxu0 %v175
    %189 = vmatpush.bf16.msra.mxu0 %v174
    %190 = vmatpush.bf16.msra.mxu0 %v173
    %191 = vmatpush.bf16.msra.mxu0 %v172
    %192 = vmatpush.bf16.msra.mxu0 %v171
    %193 = vmatpush.bf16.msra.mxu0 %v170
    %194 = vmatmul.bf16.gmra.mxu0 %v115
    %v195 = vpop.f32.mrf.mxu0
    %v196 = vadd.f32 %v136, %v195
    %v197 = vpop.f32.mrf.mxu0
    %198 = vdwg.mxu0
    %v199 = vpack.c.bf16 %v196, %v196
    %s200 = scalar_lea.vmem [#allocation2], 128
    %v201 = vld [vmem:[%s200] sm:$0xf]
    %v202 = vld [vmem:[%s200 + $0x4] sm:$0xf]
    %v203 = vld [vmem:[%s200 + $0x8] sm:$0xf]
    %v204 = vld [vmem:[%s200 + $0xc] sm:$0xf]
    %v205 = vld [vmem:[%s200 + $0x10] sm:$0xf]
    %v206 = vld [vmem:[%s200 + $0x14] sm:$0xf]
    %v207 = vld [vmem:[%s200 + $0x18] sm:$0xf]
    %v208 = vld [vmem:[%s200 + $0x1c] sm:$0xf]
    %v209 = vld [vmem:[%s200 + $0x20] sm:$0xf]
    %v210 = vld [vmem:[%s200 + $0x24] sm:$0xf]
    %v211 = vld [vmem:[%s200 + $0x28] sm:$0xf]
    %v212 = vld [vmem:[%s200 + $0x2c] sm:$0xf]
    %v213 = vld [vmem:[%s200 + $0x30] sm:$0xf]
    %v214 = vld [vmem:[%s200 + $0x34] sm:$0xf]
    %v215 = vld [vmem:[%s200 + $0x38] sm:$0xf]
    %v216 = vld [vmem:[%s200 + $0x3c] sm:$0xf]
    %s217 = scalar_lea.vmem %s2, 2
    %v218 = vld [vmem:[%s217] sm:$0x1]
    %v220 = vperm.slane %v218, 0
    %v238 = vunpack.c.l.b16 %v201
    %v239 = vunpack.c.l.b16 %v202
    %v240 = vunpack.c.l.b16 %v203
    %v241 = vunpack.c.l.b16 %v204
    %v242 = vunpack.c.l.b16 %v205
    %v243 = vunpack.c.l.b16 %v206
    %v244 = vunpack.c.l.b16 %v207
    %v245 = vunpack.c.l.b16 %v208
    %v246 = vunpack.c.l.b16 %v209
    %v247 = vunpack.c.l.b16 %v210
    %v248 = vunpack.c.l.b16 %v211
    %v249 = vunpack.c.l.b16 %v212
    %v250 = vunpack.c.l.b16 %v213
    %v251 = vunpack.c.l.b16 %v214
    %v252 = vunpack.c.l.b16 %v215
    %v253 = vunpack.c.l.b16 %v216
    %v254 = vpack.c.b16 %v239, %v238
    %v255 = vpack.c.b16 %v241, %v240
    %v256 = vpack.c.b16 %v243, %v242
    %v257 = vpack.c.b16 %v245, %v244
    %v258 = vpack.c.b16 %v247, %v246
    %v259 = vpack.c.b16 %v249, %v248
    %v260 = vpack.c.b16 %v251, %v250
    %v261 = vpack.c.b16 %v253, %v252
    %270 = vmatpush.bf16.msra.mxu0 %v261
    %271 = vmatpush.bf16.msra.mxu0 %v260
    %272 = vmatpush.bf16.msra.mxu0 %v259
    %273 = vmatpush.bf16.msra.mxu0 %v258
    %274 = vmatpush.bf16.msra.mxu0 %v257
    %275 = vmatpush.bf16.msra.mxu0 %v256
    %276 = vmatpush.bf16.msra.mxu0 %v255
    %277 = vmatpush.bf16.msra.mxu0 %v254
    %278 = vmatmul.bf16.gmra.mxu0 %v199
    %v279 = vpop.f32.mrf.mxu0
    %v280 = vadd.f32 %v220, %v279
    %v281 = vpop.f32.mrf.mxu0
    %282 = vdwg.mxu0
    %vm283 = vcmp.gt.f32.partialorder %v280, 0.0
    %v284 = vmul.f32 %v280, 0.01
    %v285 = vsel %vm283, %v280, %v284
    %v286 = vpack.c.bf16 %v285, %v285
    %s287 = scalar_lea.vmem [#allocation2], 192
    %v288 = vld [vmem:[%s287] sm:$0xf]
    %v289 = vld [vmem:[%s287 + $0x4] sm:$0xf]
    %v290 = vld [vmem:[%s287 + $0x8] sm:$0xf]
    %v291 = vld [vmem:[%s287 + $0xc] sm:$0xf]
    %v292 = vld [vmem:[%s287 + $0x10] sm:$0xf]
    %v293 = vld [vmem:[%s287 + $0x14] sm:$0xf]
    %v294 = vld [vmem:[%s287 + $0x18] sm:$0xf]
    %v295 = vld [vmem:[%s287 + $0x1c] sm:$0xf]
    %v296 = vld [vmem:[%s287 + $0x20] sm:$0xf]
    %v297 = vld [vmem:[%s287 + $0x24] sm:$0xf]
    %v298 = vld [vmem:[%s287 + $0x28] sm:$0xf]
    %v299 = vld [vmem:[%s287 + $0x2c] sm:$0xf]
    %v300 = vld [vmem:[%s287 + $0x30] sm:$0xf]
    %v301 = vld [vmem:[%s287 + $0x34] sm:$0xf]
    %v302 = vld [vmem:[%s287 + $0x38] sm:$0xf]
    %v303 = vld [vmem:[%s287 + $0x3c] sm:$0xf]
    %s304 = scalar_lea.vmem %s2, 3
    %v305 = vld [vmem:[%s304] sm:$0x1]
    %v307 = vperm.slane %v305, 0
    %v325 = vunpack.c.l.b16 %v288
    %v326 = vunpack.c.l.b16 %v289
    %v327 = vunpack.c.l.b16 %v290
    %v328 = vunpack.c.l.b16 %v291
    %v329 = vunpack.c.l.b16 %v292
    %v330 = vunpack.c.l.b16 %v293
    %v331 = vunpack.c.l.b16 %v294
    %v332 = vunpack.c.l.b16 %v295
    %v333 = vunpack.c.l.b16 %v296
    %v334 = vunpack.c.l.b16 %v297
    %v335 = vunpack.c.l.b16 %v298
    %v336 = vunpack.c.l.b16 %v299
    %v337 = vunpack.c.l.b16 %v300
    %v338 = vunpack.c.l.b16 %v301
    %v339 = vunpack.c.l.b16 %v302
    %v340 = vunpack.c.l.b16 %v303
    %v341 = vpack.c.b16 %v326, %v325
    %v342 = vpack.c.b16 %v328, %v327
    %v343 = vpack.c.b16 %v330, %v329
    %v344 = vpack.c.b16 %v332, %v331
    %v345 = vpack.c.b16 %v334, %v333
    %v346 = vpack.c.b16 %v336, %v335
    %v347 = vpack.c.b16 %v338, %v337
    %v348 = vpack.c.b16 %v340, %v339
    %357 = vmatpush.bf16.msra.mxu0 %v348
    %358 = vmatpush.bf16.msra.mxu0 %v347
    %359 = vmatpush.bf16.msra.mxu0 %v346
    %360 = vmatpush.bf16.msra.mxu0 %v345
    %361 = vmatpush.bf16.msra.mxu0 %v344
    %362 = vmatpush.bf16.msra.mxu0 %v343
    %363 = vmatpush.bf16.msra.mxu0 %v342
    %364 = vmatpush.bf16.msra.mxu0 %v341
    %365 = vmatmul.bf16.gmra.mxu0 %v286
    %v366 = vpop.f32.mrf.mxu0
    %v367 = vadd.f32 %v307, %v366
    %v368 = vpop.f32.mrf.mxu0
    %369 = vdwg.mxu0
    %370 = vst [vmem:[%s3] sm:$0x3] %v367
    // Predicated region
    $region18: #{forward.1} parent=1 // pred_check
      _
    $region19: #{forward.1} parent=1 // pred_check_branch
      %372 = sbr.rel (0) target = $region21
    $region20: #{forward.1} parent=1 // pred_region
      _
    $region21: #{forward.1} parent=1 // pred_fallthru
      _
    // Predicated region
    $region22: #{forward.1} parent=1 // pred_check
      _
    $region23: #{forward.1} parent=1 // pred_check_branch
      %374 = sbr.rel (0) target = $region25
    $region24: #{forward.1} parent=1 // pred_region
      _
    $region25: #{forward.1} parent=1 // pred_fallthru
      _
    %375 = vsyncpa [#allocation3], 1

</llo_original>
